<compile_context>
chip_gen: v6e
topology: v6e:2x2x1
jax: 0.10.0
libtpu: 0.0.40
codegen_flags: <defaults>
</compile_context>

<pallas_src>
import functools

import jax
import jax.numpy as jnp
from jax.experimental import pallas as pl
from jax.experimental.pallas import tpu as pltpu

F32 = jnp.float32


def _round_up(x: int, m: int) -> int:
    return ((x + m - 1) // m) * m


# ----------------------------- Pallas kernel -------------------------------

def _expert_kernel(x_ref, k_ref, w1_ref, b1_ref, w2_ref, b2_ref,
                   w3_ref, b3_ref, o_ref):
    # x_ref/k_ref : (C, TN)   channels on sublanes, pixels on lanes
    # w1/w2       : (Lpad, C), b1/b2 : (Lpad, 1)
    # w3          : (C, Lpad), b3    : (C, 1)
    x = x_ref[...].astype(jnp.float32)
    k = k_ref[...].astype(jnp.float32)
    a = jnp.dot(w1_ref[...], x, preferred_element_type=jnp.float32) + b1_ref[...]
    g = jnp.dot(w2_ref[...], k, preferred_element_type=jnp.float32) + b2_ref[...]
    h = a * g                                                 # gating (VPU, f32)
    y = jnp.dot(w3_ref[...], h, preferred_element_type=jnp.float32) + b3_ref[...]
    o_ref[...] = y.astype(o_ref.dtype)


def _pick_tile_n(hw: int, c: int, lpad: int, tile_n: int,
                 vmem_budget_bytes: int) -> int:
    """Largest 128-multiple pixel tile that keeps the pipeline in budget."""
    # double-buffered x/k/out tiles (f32 worst case) + a/g/h intermediates
    bytes_per_col = (2 * 3 * c + 3 * lpad) * 4
    cap = max(128, (vmem_budget_bytes // bytes_per_col) // 128 * 128)
    tn = min(tile_n, cap, _round_up(hw, 128))
    return max(128, (tn // 128) * 128)


# ------------------------------ NCHW wrapper --------------------------------

def expert_forward(x_nchw, k_nchw, params, *, tile_n=8192, io_dtype=None):
    """Matches Expert.forward(x, k) of the PyTorch module (NCHW in / NCHW out).

    io_dtype=jnp.bfloat16 casts only the big x/k streams at the kernel boundary
    (accumulation and gating stay f32); default None keeps exact f32 I/O.
    """
    b, c, h, w = x_nchw.shape
    hw = h * w
    low = params["conv1_w"].shape[0]
    lpad = _round_up(max(low, 1), 8)              # f32 sublane granularity only

    # (B, C, H, W) -> (B, C, H*W): a free reshape, NO transpose / HBM round trip.
    x3 = x_nchw.reshape(b, c, hw)
    k3 = k_nchw.reshape(b, c, hw)
    if io_dtype is not None:
        x3 = x3.astype(io_dtype)
        k3 = k3.astype(io_dtype)

    # Zero-pad the tiny low-rank dim to sublane granularity (numerically exact:
    # padded weight rows/cols and padded bias entries are all zero).
    w1 = params["conv1_w"][:, :, 0, 0].astype(F32)            # (low, C)
    w2 = params["conv2_w"][:, :, 0, 0].astype(F32)            # (low, C)
    w3 = params["conv3_w"][:, :, 0, 0].astype(F32)            # (C, low)
    w1p = jnp.zeros((lpad, c), F32).at[:low].set(w1)
    w2p = jnp.zeros((lpad, c), F32).at[:low].set(w2)
    w3p = jnp.zeros((c, lpad), F32).at[:, :low].set(w3)
    b1p = jnp.zeros((lpad, 1), F32).at[:low, 0].set(params["conv1_b"].astype(F32))
    b2p = jnp.zeros((lpad, 1), F32).at[:low, 0].set(params["conv2_b"].astype(F32))
    b3p = params["conv3_b"].astype(F32).reshape(c, 1)

    # ~24 MiB working-set budget -> fits the 32 MiB scoped VMEM default on
    # every generation (v5e gets the limit raised explicitly below).
    tn = _pick_tile_n(hw, c, lpad, tile_n, vmem_budget_bytes=24 << 20)
    grid = (b, pl.cdiv(hw, tn))
    # Ragged pixel tails: Pallas masks the partial last block; garbage in the
    # padded lanes never reaches HBM because OOB output columns are discarded.

    out = pl.pallas_call(
        _expert_kernel,
        out_shape=jax.ShapeDtypeStruct((b, c, hw), F32),
        grid=grid,
        in_specs=[
            pl.BlockSpec((None, c, tn), lambda bi, i: (bi, 0, i)),   # x tile
            pl.BlockSpec((None, c, tn), lambda bi, i: (bi, 0, i)),   # k tile
            pl.BlockSpec((lpad, c), lambda bi, i: (0, 0)),           # W1 (resident)
            pl.BlockSpec((lpad, 1), lambda bi, i: (0, 0)),           # b1
            pl.BlockSpec((lpad, c), lambda bi, i: (0, 0)),           # W2
            pl.BlockSpec((lpad, 1), lambda bi, i: (0, 0)),           # b2
            pl.BlockSpec((c, lpad), lambda bi, i: (0, 0)),           # W3
            pl.BlockSpec((c, 1), lambda bi, i: (0, 0)),              # b3
        ],
        out_specs=pl.BlockSpec((None, c, tn), lambda bi, i: (bi, 0, i)),
        compiler_params=pltpu.CompilerParams(
            dimension_semantics=("parallel", "parallel"),   # batch x pixel tiles
            vmem_limit_bytes=32 << 20),                     # raise v5e's 16 MiB default
    )(x3, k3, w1p, b1p, w2p, b2p, w3p, b3p)

    return out.reshape(b, c, h, w)


# ----------------------------- params & reference ---------------------------

def init_params(key, in_ch, low_dim):
    ks = jax.random.split(key, 6)

    def rnd(k, shape, scale):
        return jax.random.normal(k, shape, F32) * scale

    return {
        "conv1_w": rnd(ks[0], (low_dim, in_ch, 1, 1), 0.2),
        "conv1_b": rnd(ks[1], (low_dim,), 0.05),
        "conv2_w": rnd(ks[2], (low_dim, in_ch, 1, 1), 0.2),
        "conv2_b": rnd(ks[3], (low_dim,), 0.05),
        "conv3_w": rnd(ks[4], (in_ch, low_dim, 1, 1), 0.2),
        "conv3_b": rnd(ks[5], (in_ch,), 0.05),
    }


def expert_reference(x, k, params):
    """Plain-JAX reference mirroring the PyTorch module (for validation)."""
    w1 = params["conv1_w"][:, :, 0, 0]
    w2 = params["conv2_w"][:, :, 0, 0]
    w3 = params["conv3_w"][:, :, 0, 0]
    a = jnp.einsum("bchw,lc->blhw", x, w1) + params["conv1_b"][None, :, None, None]
    g = jnp.einsum("bchw,lc->blhw", k, w2) + params["conv2_b"][None, :, None, None]
    h = a * g
    return jnp.einsum("blhw,cl->bchw", h, w3) + params["conv3_b"][None, :, None, None]


# --------------------------------- main --------------------------------------

if __name__ == "__main__":
    B, C, H, W = 2, 8, 16, 16
    LOW_DIM = 4

    key = jax.random.PRNGKey(0)
    kx, kk, kp = jax.random.split(key, 3)
    x = jax.random.normal(kx, (B, C, H, W), F32)
    k = jax.random.normal(kk, (B, C, H, W), F32)
    params = init_params(kp, C, LOW_DIM)

    y_ref = expert_reference(x, k, params)

    # exact f32 path
    fwd = jax.jit(functools.partial(expert_forward, tile_n=8192))
    y = fwd(x, k, params)
    jax.block_until_ready(y)
    assert y.shape == (B, C, H, W) and y.dtype == F32
    max_err = float(jnp.max(jnp.abs(y - y_ref)))
    assert max_err < 1e-4, f"f32 path max abs error vs reference: {max_err}"

    # bandwidth-saving bf16-I/O path (f32 accumulate), looser tolerance
    fwd_bf16 = jax.jit(functools.partial(expert_forward, tile_n=8192,
                                         io_dtype=jnp.bfloat16))
    y16 = fwd_bf16(x, k, params)
    jax.block_until_ready(y16)
    max_err16 = float(jnp.max(jnp.abs(y16 - y_ref)))
    assert max_err16 < 5e-2, f"bf16-I/O path max abs error vs reference: {max_err16}"

    print("KERNEL_OK")
</pallas_src>

<mosaic_0001>
module attributes {stable_mosaic.version = 11 : i64} {
  func.func @_expert_kernel(%arg0: i32, %arg1: i32, %arg2: memref<1x8x256xf32, #tpu.memory_space<vmem>>, %arg3: memref<1x8x256xf32, #tpu.memory_space<vmem>>, %arg4: memref<8x8xf32, #tpu.memory_space<vmem>>, %arg5: memref<8x1xf32, #tpu.memory_space<vmem>>, %arg6: memref<8x8xf32, #tpu.memory_space<vmem>>, %arg7: memref<8x1xf32, #tpu.memory_space<vmem>>, %arg8: memref<8x8xf32, #tpu.memory_space<vmem>>, %arg9: memref<8x1xf32, #tpu.memory_space<vmem>>, %arg10: memref<1x8x256xf32, #tpu.memory_space<vmem>>) attributes {dimension_semantics = [#tpu.dimension_semantics<parallel>, #tpu.dimension_semantics<parallel>], iteration_bounds = array<i64: 2, 1>, scalar_prefetch = 0 : i64, scratch_operands = 0 : i64, tpu.core_type = #tpu.core_type<tc>, window_params = [{transform_indices = @transform_0, window_bounds = array<i64: 1, 8, 256>}, {transform_indices = @transform_1, window_bounds = array<i64: 1, 8, 256>}, {pipeline_mode = #tpu.pipeline_mode<synchronous>, transform_indices = @transform_2, window_bounds = array<i64: 8, 8>}, {pipeline_mode = #tpu.pipeline_mode<synchronous>, transform_indices = @transform_3, window_bounds = array<i64: 8, 1>}, {pipeline_mode = #tpu.pipeline_mode<synchronous>, transform_indices = @transform_4, window_bounds = array<i64: 8, 8>}, {pipeline_mode = #tpu.pipeline_mode<synchronous>, transform_indices = @transform_5, window_bounds = array<i64: 8, 1>}, {pipeline_mode = #tpu.pipeline_mode<synchronous>, transform_indices = @transform_6, window_bounds = array<i64: 8, 8>}, {pipeline_mode = #tpu.pipeline_mode<synchronous>, transform_indices = @transform_7, window_bounds = array<i64: 8, 1>}, {transform_indices = @transform_8, window_bounds = array<i64: 1, 8, 256>}]} {
    %c0 = arith.constant 0 : index
    %c0_0 = arith.constant 0 : index
    %c0_1 = arith.constant 0 : index
    %0 = vector.load %arg2[%c0, %c0_0, %c0_1] : memref<1x8x256xf32, #tpu.memory_space<vmem>>, vector<1x8x256xf32>
    %1 = vector.shape_cast %0 : vector<1x8x256xf32> to vector<8x256xf32>
    %c0_2 = arith.constant 0 : index
    %c0_3 = arith.constant 0 : index
    %c0_4 = arith.constant 0 : index
    %2 = vector.load %arg3[%c0_2, %c0_3, %c0_4] : memref<1x8x256xf32, #tpu.memory_space<vmem>>, vector<1x8x256xf32>
    %3 = vector.shape_cast %2 : vector<1x8x256xf32> to vector<8x256xf32>
    %c0_5 = arith.constant 0 : index
    %c0_6 = arith.constant 0 : index
    %4 = vector.load %arg4[%c0_5, %c0_6] : memref<8x8xf32, #tpu.memory_space<vmem>>, vector<8x8xf32>
    %cst = arith.constant dense<0.000000e+00> : vector<8x256xf32>
    %5 = tpu.matmul %4, %1, %cst {dimension_numbers = #tpu.dot_dimension_numbers<[1], [0], [0], [1], [0, 0, 1, 1], [], []>} : vector<8x8xf32>, vector<8x256xf32>, vector<8x256xf32> -> vector<8x256xf32>
    %c0_7 = arith.constant 0 : index
    %c0_8 = arith.constant 0 : index
    %6 = vector.load %arg5[%c0_7, %c0_8] : memref<8x1xf32, #tpu.memory_space<vmem>>, vector<8x1xf32>
    %7 = vector.broadcast %6 : vector<8x1xf32> to vector<8x256xf32>
    %8 = arith.addf %5, %7 : vector<8x256xf32>
    %c0_9 = arith.constant 0 : index
    %c0_10 = arith.constant 0 : index
    %9 = vector.load %arg6[%c0_9, %c0_10] : memref<8x8xf32, #tpu.memory_space<vmem>>, vector<8x8xf32>
    %cst_11 = arith.constant dense<0.000000e+00> : vector<8x256xf32>
    %10 = tpu.matmul %9, %3, %cst_11 {dimension_numbers = #tpu.dot_dimension_numbers<[1], [0], [0], [1], [0, 0, 1, 1], [], []>} : vector<8x8xf32>, vector<8x256xf32>, vector<8x256xf32> -> vector<8x256xf32>
    %c0_12 = arith.constant 0 : index
    %c0_13 = arith.constant 0 : index
    %11 = vector.load %arg7[%c0_12, %c0_13] : memref<8x1xf32, #tpu.memory_space<vmem>>, vector<8x1xf32>
    %12 = vector.broadcast %11 : vector<8x1xf32> to vector<8x256xf32>
    %13 = arith.addf %10, %12 : vector<8x256xf32>
    %14 = arith.mulf %8, %13 : vector<8x256xf32>
    %c0_14 = arith.constant 0 : index
    %c0_15 = arith.constant 0 : index
    %15 = vector.load %arg8[%c0_14, %c0_15] : memref<8x8xf32, #tpu.memory_space<vmem>>, vector<8x8xf32>
    %cst_16 = arith.constant dense<0.000000e+00> : vector<8x256xf32>
    %16 = tpu.matmul %15, %14, %cst_16 {dimension_numbers = #tpu.dot_dimension_numbers<[1], [0], [0], [1], [0, 0, 1, 1], [], []>} : vector<8x8xf32>, vector<8x256xf32>, vector<8x256xf32> -> vector<8x256xf32>
    %c0_17 = arith.constant 0 : index
    %c0_18 = arith.constant 0 : index
    %17 = vector.load %arg9[%c0_17, %c0_18] : memref<8x1xf32, #tpu.memory_space<vmem>>, vector<8x1xf32>
    %18 = vector.broadcast %17 : vector<8x1xf32> to vector<8x256xf32>
    %19 = arith.addf %16, %18 : vector<8x256xf32>
    %c0_19 = arith.constant 0 : index
    %c0_20 = arith.constant 0 : index
    %c0_21 = arith.constant 0 : index
    %20 = vector.load %arg10[%c0_19, %c0_20, %c0_21] : memref<1x8x256xf32, #tpu.memory_space<vmem>>, vector<1x8x256xf32>
    %21 = vector.shape_cast %20 : vector<1x8x256xf32> to vector<8x256xf32>
    %22 = vector.shape_cast %19 : vector<8x256xf32> to vector<1x8x256xf32>
    tpu.vector_store %arg10[%c0_19, %c0_20, %c0_21], %22 {strides = array<i32>} : memref<1x8x256xf32, #tpu.memory_space<vmem>>, vector<1x8x256xf32>,
    return
  }
  func.func @transform_0(%arg0: i32, %arg1: i32) -> (i32, i32, i32) {
    %c0_i32 = arith.constant 0 : i32
    %c0_i32_0 = arith.constant 0 : i32
    return %arg0, %c0_i32, %arg1 : i32, i32, i32
  }
  func.func @transform_1(%arg0: i32, %arg1: i32) -> (i32, i32, i32) {
    %c0_i32 = arith.constant 0 : i32
    %c0_i32_0 = arith.constant 0 : i32
    return %arg0, %c0_i32, %arg1 : i32, i32, i32
  }
  func.func @transform_2(%arg0: i32, %arg1: i32) -> (i32, i32) {
    %c0_i32 = arith.constant 0 : i32
    %c0_i32_0 = arith.constant 0 : i32
    %c0_i32_1 = arith.constant 0 : i32
    return %c0_i32, %c0_i32_0 : i32, i32
  }
  func.func @transform_3(%arg0: i32, %arg1: i32) -> (i32, i32) {
    %c0_i32 = arith.constant 0 : i32
    %c0_i32_0 = arith.constant 0 : i32
    %c0_i32_1 = arith.constant 0 : i32
    return %c0_i32, %c0_i32_0 : i32, i32
  }
  func.func @transform_4(%arg0: i32, %arg1: i32) -> (i32, i32) {
    %c0_i32 = arith.constant 0 : i32
    %c0_i32_0 = arith.constant 0 : i32
    %c0_i32_1 = arith.constant 0 : i32
    return %c0_i32, %c0_i32_0 : i32, i32
  }
  func.func @transform_5(%arg0: i32, %arg1: i32) -> (i32, i32) {
    %c0_i32 = arith.constant 0 : i32
    %c0_i32_0 = arith.constant 0 : i32
    %c0_i32_1 = arith.constant 0 : i32
    return %c0_i32, %c0_i32_0 : i32, i32
  }
  func.func @transform_6(%arg0: i32, %arg1: i32) -> (i32, i32) {
    %c0_i32 = arith.constant 0 : i32
    %c0_i32_0 = arith.constant 0 : i32
    %c0_i32_1 = arith.constant 0 : i32
    return %c0_i32, %c0_i32_0 : i32, i32
  }
  func.func @transform_7(%arg0: i32, %arg1: i32) -> (i32, i32) {
    %c0_i32 = arith.constant 0 : i32
    %c0_i32_0 = arith.constant 0 : i32
    %c0_i32_1 = arith.constant 0 : i32
    return %c0_i32, %c0_i32_0 : i32, i32
  }
  func.func @transform_8(%arg0: i32, %arg1: i32) -> (i32, i32, i32) {
    %c0_i32 = arith.constant 0 : i32
    %c0_i32_0 = arith.constant 0 : i32
    return %arg0, %c0_i32, %arg1 : i32, i32, i32
  }
}

</mosaic_0001>

<llo_original>
// kernel: expert_forward.1
$region0: #{expert_forward.1}
  #allocation0 [shape = 'u32[]', space=smem, size = 0x4, offset = 0x4, fixed_abs, tag = 'smem constant byte address 0x4 - core index']
  #allocation1 [shape = 'u32[144,128]{1,0:T(1,128)}', space=vmem, size = 0x12000, scoped, tag = 'internal scratch']
  %s0 = inlined_call_operand.vmem [shape: f32[2,8,256], index: 0, kind: input, shape index: {}]
  %s1 = inlined_call_operand.vmem [shape: f32[2,8,256], index: 1, kind: input, shape index: {}]
  %s2 = inlined_call_operand.vmem [shape: f32[8,8], index: 2, kind: input, shape index: {}]
  %s3 = inlined_call_operand.vmem [shape: f32[8,1], index: 3, kind: input, shape index: {}]
  %s4 = inlined_call_operand.vmem [shape: f32[8,8], index: 4, kind: input, shape index: {}]
  %s5 = inlined_call_operand.vmem [shape: f32[8,1], index: 5, kind: input, shape index: {}]
  %s6 = inlined_call_operand.vmem [shape: f32[8,8], index: 6, kind: input, shape index: {}]
  %s7 = inlined_call_operand.vmem [shape: f32[8,1], index: 7, kind: input, shape index: {}]
  %s8 = inlined_call_operand.vmem [shape: f32[2,8,256], index: 8, kind: output, shape index: {}]
  %s9 = sld [smem:[#allocation0]]
  $region65: #{expert_forward.1} parent=0
    _
  %s11 = ssub.s32 1, %s9
  %s12 = scalar_select 0, %s11, %s9
  loop: start=0, step=1, limit=4
  $region2: #{expert_forward.1} parent=0 // loop_pre_header
    _
  $region3: #{expert_forward.1} parent=0 // loop_header
    %s14 = sphi 0, %s18
    %p15 = scmp.ge.s32.totalorder %s14, 4
    %s21 = sphi 0, %s33
    %s22 = sphi 0, %s29
    %s23 = sphi 0, %s21
    %s24 = sphi 0, %s22
    %s25 = sphi 0, %s23
    %s26 = sphi 0, %s24
    %s38 = sphi 0, %s40
    %s41 = sphi 0, %s38
    %s42 = sphi 0, %s41
    %s58 = sphi 0, %s42
    %s66 = sphi 0, %s68
    %s69 = sphi 0, %s66
    %s70 = sphi 0, %s69
    %s86 = sphi 0, %s70
    %s90 = sphi 0, %s90
    %s92 = sphi 0, %s90
    %s93 = sphi 0, %s92
    %s107 = sphi 0, %s93
    %s111 = sphi 0, %s111
    %s113 = sphi 0, %s111
    %s114 = sphi 0, %s113
    %s128 = sphi 0, %s114
    %s132 = sphi 0, %s132
    %s134 = sphi 0, %s132
    %s135 = sphi 0, %s134
    %s149 = sphi 0, %s135
    %s153 = sphi 0, %s153
    %s155 = sphi 0, %s153
    %s156 = sphi 0, %s155
    %s170 = sphi 0, %s156
    %s174 = sphi 0, %s174
    %s176 = sphi 0, %s174
    %s177 = sphi 0, %s176
    %s191 = sphi 0, %s177
    %s195 = sphi 0, %s195
    %s197 = sphi 0, %s195
    %s198 = sphi 0, %s197
    %s212 = sphi 0, %s198
    %s220 = sphi 0, %s222
    %s223 = sphi 0, %s220
    %s224 = sphi 0, %s223
    %s240 = sphi 0, %s224
  $region4: #{expert_forward.1} parent=0 // loop_header_branch
    %17 = sbr.rel (%p15) target = $region8
  $region5: #{expert_forward.1} parent=0 // loop_body
    %s19 = ssub.s32 %s14, 1
    %s20 = ssub.s32 %s14, 2
    %s27 = sadd.s32 1, %s22
    %p28 = scmp.ge.s32.totalorder %s27, 1
    %s29 = scalar_select %p28, 0, %s27
    %s30 = sadd.s32 1, %s21
    %s31 = scalar_select %p28, %s30, %s21
    %p32 = scmp.ge.s32.totalorder %s31, 2
    %s33 = scalar_select %p32, 0, %s31
    %s34 = ssub.s32 %s21, %s33
    %s35 = ssub.s32 %s22, %s29
    %s36 = sor.u32 %s34, %s35
    %p37 = scmp.eq.s32.totalorder %s36, 0
    %s39 = sadd.s32 %s38, 1
    %s40 = scalar_select %p37, %s38, %s39
    %p43 = pneg %p37
    %p44 = scmp.eq.s32.totalorder %s14, 1
    %p45 = por %p43, %p44
    %p46 = scmp.ne.s32.totalorder %s38, %s41
    %p47 = scmp.eq.s32.totalorder %s14, 0
    %p48 = por %p46, %p47
    %p49 = scmp.ne.s32.totalorder %s38, %s41
    %p50 = scmp.eq.s32.totalorder %s19, 1
    %p51 = por %p49, %p50
    %p52 = scmp.ne.s32.totalorder %s41, %s42
    %p53 = scmp.eq.s32.totalorder %s19, 0
    %p54 = por %p52, %p53
    %p55 = scmp.ne.s32.totalorder %s41, %s42
    %p56 = scmp.eq.s32.totalorder %s20, 1
    %p57 = por %p55, %p56
    %p59 = scmp.ne.s32.totalorder %s42, %s58
    %p60 = scmp.eq.s32.totalorder %s20, 0
    %p61 = por %p59, %p60
    %s62 = ssub.s32 %s21, %s33
    %s63 = ssub.s32 %s22, %s29
    %s64 = sor.u32 %s62, %s63
    %p65 = scmp.eq.s32.totalorder %s64, 0
    %s67 = sadd.s32 %s66, 1
    %s68 = scalar_select %p65, %s66, %s67
    %p71 = pneg %p65
    %p72 = scmp.eq.s32.totalorder %s14, 1
    %p73 = por %p71, %p72
    %p74 = scmp.ne.s32.totalorder %s66, %s69
    %p75 = scmp.eq.s32.totalorder %s14, 0
    %p76 = por %p74, %p75
    %p77 = scmp.ne.s32.totalorder %s66, %s69
    %p78 = scmp.eq.s32.totalorder %s19, 1
    %p79 = por %p77, %p78
    %p80 = scmp.ne.s32.totalorder %s69, %s70
    %p81 = scmp.eq.s32.totalorder %s19, 0
    %p82 = por %p80, %p81
    %p83 = scmp.ne.s32.totalorder %s69, %s70
    %p84 = scmp.eq.s32.totalorder %s20, 1
    %p85 = por %p83, %p84
    %p87 = scmp.ne.s32.totalorder %s70, %s86
    %p88 = scmp.eq.s32.totalorder %s20, 0
    %p89 = por %p87, %p88
    %s91 = sadd.s32 %s90, 1
    %p94 = scmp.eq.s32.totalorder %s14, 1
    %p95 = scmp.ne.s32.totalorder %s90, %s92
    %p96 = scmp.eq.s32.totalorder %s14, 0
    %p97 = por %p95, %p96
    %p98 = scmp.ne.s32.totalorder %s90, %s92
    %p99 = scmp.eq.s32.totalorder %s19, 1
    %p100 = por %p98, %p99
    %p101 = scmp.ne.s32.totalorder %s92, %s93
    %p102 = scmp.eq.s32.totalorder %s19, 0
    %p103 = por %p101, %p102
    %p104 = scmp.ne.s32.totalorder %s92, %s93
    %p105 = scmp.eq.s32.totalorder %s20, 1
    %p106 = por %p104, %p105
    %p108 = scmp.ne.s32.totalorder %s93, %s107
    %p109 = scmp.eq.s32.totalorder %s20, 0
    %p110 = por %p108, %p109
    %s112 = sadd.s32 %s111, 1
    %p115 = scmp.eq.s32.totalorder %s14, 1
    %p116 = scmp.ne.s32.totalorder %s111, %s113
    %p117 = scmp.eq.s32.totalorder %s14, 0
    %p118 = por %p116, %p117
    %p119 = scmp.ne.s32.totalorder %s111, %s113
    %p120 = scmp.eq.s32.totalorder %s19, 1
    %p121 = por %p119, %p120
    %p122 = scmp.ne.s32.totalorder %s113, %s114
    %p123 = scmp.eq.s32.totalorder %s19, 0
    %p124 = por %p122, %p123
    %p125 = scmp.ne.s32.totalorder %s113, %s114
    %p126 = scmp.eq.s32.totalorder %s20, 1
    %p127 = por %p125, %p126
    %p129 = scmp.ne.s32.totalorder %s114, %s128
    %p130 = scmp.eq.s32.totalorder %s20, 0
    %p131 = por %p129, %p130
    %s133 = sadd.s32 %s132, 1
    %p136 = scmp.eq.s32.totalorder %s14, 1
    %p137 = scmp.ne.s32.totalorder %s132, %s134
    %p138 = scmp.eq.s32.totalorder %s14, 0
    %p139 = por %p137, %p138
    %p140 = scmp.ne.s32.totalorder %s132, %s134
    %p141 = scmp.eq.s32.totalorder %s19, 1
    %p142 = por %p140, %p141
    %p143 = scmp.ne.s32.totalorder %s134, %s135
    %p144 = scmp.eq.s32.totalorder %s19, 0
    %p145 = por %p143, %p144
    %p146 = scmp.ne.s32.totalorder %s134, %s135
    %p147 = scmp.eq.s32.totalorder %s20, 1
    %p148 = por %p146, %p147
    %p150 = scmp.ne.s32.totalorder %s135, %s149
    %p151 = scmp.eq.s32.totalorder %s20, 0
    %p152 = por %p150, %p151
    %s154 = sadd.s32 %s153, 1
    %p157 = scmp.eq.s32.totalorder %s14, 1
    %p158 = scmp.ne.s32.totalorder %s153, %s155
    %p159 = scmp.eq.s32.totalorder %s14, 0
    %p160 = por %p158, %p159
    %p161 = scmp.ne.s32.totalorder %s153, %s155
    %p162 = scmp.eq.s32.totalorder %s19, 1
    %p163 = por %p161, %p162
    %p164 = scmp.ne.s32.totalorder %s155, %s156
    %p165 = scmp.eq.s32.totalorder %s19, 0
    %p166 = por %p164, %p165
    %p167 = scmp.ne.s32.totalorder %s155, %s156
    %p168 = scmp.eq.s32.totalorder %s20, 1
    %p169 = por %p167, %p168
    %p171 = scmp.ne.s32.totalorder %s156, %s170
    %p172 = scmp.eq.s32.totalorder %s20, 0
    %p173 = por %p171, %p172
    %s175 = sadd.s32 %s174, 1
    %p178 = scmp.eq.s32.totalorder %s14, 1
    %p179 = scmp.ne.s32.totalorder %s174, %s176
    %p180 = scmp.eq.s32.totalorder %s14, 0
    %p181 = por %p179, %p180
    %p182 = scmp.ne.s32.totalorder %s174, %s176
    %p183 = scmp.eq.s32.totalorder %s19, 1
    %p184 = por %p182, %p183
    %p185 = scmp.ne.s32.totalorder %s176, %s177
    %p186 = scmp.eq.s32.totalorder %s19, 0
    %p187 = por %p185, %p186
    %p188 = scmp.ne.s32.totalorder %s176, %s177
    %p189 = scmp.eq.s32.totalorder %s20, 1
    %p190 = por %p188, %p189
    %p192 = scmp.ne.s32.totalorder %s177, %s191
    %p193 = scmp.eq.s32.totalorder %s20, 0
    %p194 = por %p192, %p193
    %s196 = sadd.s32 %s195, 1
    %p199 = scmp.eq.s32.totalorder %s14, 1
    %p200 = scmp.ne.s32.totalorder %s195, %s197
    %p201 = scmp.eq.s32.totalorder %s14, 0
    %p202 = por %p200, %p201
    %p203 = scmp.ne.s32.totalorder %s195, %s197
    %p204 = scmp.eq.s32.totalorder %s19, 1
    %p205 = por %p203, %p204
    %p206 = scmp.ne.s32.totalorder %s197, %s198
    %p207 = scmp.eq.s32.totalorder %s19, 0
    %p208 = por %p206, %p207
    %p209 = scmp.ne.s32.totalorder %s197, %s198
    %p210 = scmp.eq.s32.totalorder %s20, 1
    %p211 = por %p209, %p210
    %p213 = scmp.ne.s32.totalorder %s198, %s212
    %p214 = scmp.eq.s32.totalorder %s20, 0
    %p215 = por %p213, %p214
    %s216 = ssub.s32 %s21, %s33
    %s217 = ssub.s32 %s22, %s29
    %s218 = sor.u32 %s216, %s217
    %p219 = scmp.eq.s32.totalorder %s218, 0
    %s221 = sadd.s32 %s220, 1
    %s222 = scalar_select %p219, %s220, %s221
    %p225 = pneg %p219
    %p226 = scmp.eq.s32.totalorder %s14, 1
    %p227 = por %p225, %p226
    %p228 = scmp.ne.s32.totalorder %s220, %s223
    %p229 = scmp.eq.s32.totalorder %s14, 0
    %p230 = por %p228, %p229
    %p231 = scmp.ne.s32.totalorder %s220, %s223
    %p232 = scmp.eq.s32.totalorder %s19, 1
    %p233 = por %p231, %p232
    %p234 = scmp.ne.s32.totalorder %s223, %s224
    %p235 = scmp.eq.s32.totalorder %s19, 0
    %p236 = por %p234, %p235
    %p237 = scmp.ne.s32.totalorder %s223, %s224
    %p238 = scmp.eq.s32.totalorder %s20, 1
    %p239 = por %p237, %p238
    %p241 = scmp.ne.s32.totalorder %s224, %s240
    %p242 = scmp.eq.s32.totalorder %s20, 0
    %p243 = por %p241, %p242
    %p244 = scmp.le.s32.totalorder 1, %s14
    %p245 = scmp.lt.s32.totalorder %s14, 3
    %p246 = pnand %p244, %p245
    %p247 = pneg %p246
    // Predicated region
    $region9: #{expert_forward.1} parent=5 // pred_check
      _
    $region10: #{expert_forward.1} parent=5 // pred_check_branch
      %249 = sbr.rel (%p246) target = $region12
    $region11: #{expert_forward.1} parent=5 // pred_region
      %s250 = ssub.s32 %s14, 1
      // Predicated region
      $region13: #{expert_forward.1} parent=11 // pred_check
        %p251 = pneg %p103
      $region14: #{expert_forward.1} parent=11 // pred_check_branch
        %253 = sbr.rel (%p251) target = $region16
      $region15: #{expert_forward.1} parent=11 // pred_region
        _
      $region16: #{expert_forward.1} parent=11 // pred_fallthru
        _
      // Predicated region
      $region17: #{expert_forward.1} parent=11 // pred_check
        %p254 = pneg %p124
      $region18: #{expert_forward.1} parent=11 // pred_check_branch
        %256 = sbr.rel (%p254) target = $region20
      $region19: #{expert_forward.1} parent=11 // pred_region
        _
      $region20: #{expert_forward.1} parent=11 // pred_fallthru
        _
      // Predicated region
      $region21: #{expert_forward.1} parent=11 // pred_check
        %p257 = pneg %p145
      $region22: #{expert_forward.1} parent=11 // pred_check_branch
        %259 = sbr.rel (%p257) target = $region24
      $region23: #{expert_forward.1} parent=11 // pred_region
        _
      $region24: #{expert_forward.1} parent=11 // pred_fallthru
        _
      // Predicated region
      $region25: #{expert_forward.1} parent=11 // pred_check
        %p260 = pneg %p166
      $region26: #{expert_forward.1} parent=11 // pred_check_branch
        %262 = sbr.rel (%p260) target = $region28
      $region27: #{expert_forward.1} parent=11 // pred_region
        _
      $region28: #{expert_forward.1} parent=11 // pred_fallthru
        _
      // Predicated region
      $region29: #{expert_forward.1} parent=11 // pred_check
        %p263 = pneg %p187
      $region30: #{expert_forward.1} parent=11 // pred_check_branch
        %265 = sbr.rel (%p263) target = $region32
      $region31: #{expert_forward.1} parent=11 // pred_region
        _
      $region32: #{expert_forward.1} parent=11 // pred_fallthru
        _
      // Predicated region
      $region33: #{expert_forward.1} parent=11 // pred_check
        %p266 = pneg %p208
      $region34: #{expert_forward.1} parent=11 // pred_check_branch
        %268 = sbr.rel (%p266) target = $region36
      $region35: #{expert_forward.1} parent=11 // pred_region
        _
      $region36: #{expert_forward.1} parent=11 // pred_fallthru
        _
    $region12: #{expert_forward.1} parent=5 // pred_fallthru
      _
    %p269 = scmp.lt.s32.totalorder %s14, 2
    // Predicated region
    $region37: #{expert_forward.1} parent=5 // pred_check
      %p270 = pneg %p269
    $region38: #{expert_forward.1} parent=5 // pred_check_branch
      %272 = sbr.rel (%p270) target = $region40
    $region39: #{expert_forward.1} parent=5 // pred_region
      // Predicated region
      $region41: #{expert_forward.1} parent=39 // pred_check
        %p273 = pneg %p48
      $region42: #{expert_forward.1} parent=39 // pred_check_branch
        %275 = sbr.rel (%p273) target = $region44
      $region43: #{expert_forward.1} parent=39 // pred_region
        %s276 = smul.u32 2, %s22
        %p277 = scmp.lt.s32.totalorder %s21, 1
        %s278 = scalar_select %p277, %s21, 1
        %p279 = scmp.lt.s32.totalorder %s276, 1
        %s280 = scalar_select %p279, %s276, 1
        %s281 = smul.addr %s278, 2
        %s282 = sadd.s32 %s280, %s281
        %s283 = smul.addr %s282, 8
        %s284 = scalar_lea.vmem %s0, %s283
        %s285 = smul.u32 2, %s22
      $region44: #{expert_forward.1} parent=39 // pred_fallthru
        _
      // Predicated region
      $region45: #{expert_forward.1} parent=39 // pred_check
        %p286 = pneg %p76
      $region46: #{expert_forward.1} parent=39 // pred_check_branch
        %288 = sbr.rel (%p286) target = $region48
      $region47: #{expert_forward.1} parent=39 // pred_region
        %s289 = smul.u32 2, %s22
        %p290 = scmp.lt.s32.totalorder %s21, 1
        %s291 = scalar_select %p290, %s21, 1
        %p292 = scmp.lt.s32.totalorder %s289, 1
        %s293 = scalar_select %p292, %s289, 1
        %s294 = smul.addr %s291, 2
        %s295 = sadd.s32 %s293, %s294
        %s296 = smul.addr %s295, 8
        %s297 = scalar_lea.vmem %s1, %s296
        %s298 = smul.u32 2, %s22
      $region48: #{expert_forward.1} parent=39 // pred_fallthru
        _
    $region40: #{expert_forward.1} parent=5 // pred_fallthru
      _
    %p299 = scmp.le.s32.totalorder 1, %s14
    %p300 = scmp.lt.s32.totalorder %s14, 3
    %p301 = pnand %p299, %p300
    %p302 = pneg %p301
    // Predicated region
    $region49: #{expert_forward.1} parent=5 // pred_check
      _
    $region50: #{expert_forward.1} parent=5 // pred_check_branch
      %304 = sbr.rel (%p301) target = $region52
    $region51: #{expert_forward.1} parent=5 // pred_region
      %s305 = ssub.s32 %s14, 1
      %s306 = smul.u32 2, %s24
      %p307 = scmp.lt.s32.totalorder %s23, 1
      %s308 = scalar_select %p307, %s23, 1
      %p309 = scmp.lt.s32.totalorder %s306, 1
      %s310 = scalar_select %p309, %s306, 1
      %s311 = smul.addr %s308, 2
      %s312 = sadd.s32 %s310, %s311
      %s313 = smul.addr %s312, 8
      %s314 = scalar_lea.vmem %s0, %s313
      %p315 = pneg %p54
      %p316 = pneg %p51
      %s317 = smul.u32 2, %s24
      %p318 = scmp.lt.s32.totalorder %s23, 1
      %s319 = scalar_select %p318, %s23, 1
      %p320 = scmp.lt.s32.totalorder %s317, 1
      %s321 = scalar_select %p320, %s317, 1
      %s322 = smul.addr %s319, 2
      %s323 = sadd.s32 %s321, %s322
      %s324 = smul.addr %s323, 8
      %s325 = scalar_lea.vmem %s1, %s324
      %p326 = pneg %p82
      %p327 = pneg %p79
      %p328 = pneg %p103
      %p329 = pneg %p100
      %p330 = pneg %p124
      %p331 = pneg %p121
      %p332 = pneg %p145
      %p333 = pneg %p142
      %p334 = pneg %p166
      %p335 = pneg %p163
      %p336 = pneg %p187
      %p337 = pneg %p184
      %p338 = pneg %p208
      %p339 = pneg %p205
      %p340 = pneg %p236
      %p341 = pneg %p233
      %s342 = smul.u32 2, %s24
      %p343 = scmp.lt.s32.totalorder %s23, 1
      %s344 = scalar_select %p343, %s23, 1
      %p345 = scmp.lt.s32.totalorder %s342, 1
      %s346 = scalar_select %p345, %s342, 1
      %s347 = smul.addr %s344, 2
      %s348 = sadd.s32 %s346, %s347
      %s349 = smul.addr %s348, 8
      %s350 = scalar_lea.vmem %s8, %s349
      %s351 = smul.u32 2, %s24
      %p352 = scmp.lt.s32.totalorder %s23, 1
      %s353 = scalar_select %p352, %s23, 1
      %p354 = scmp.lt.s32.totalorder %s351, 1
      %s355 = scalar_select %p354, %s351, 1
      %s356 = smul.addr %s353, 2
      %s357 = sadd.s32 %s355, %s356
      %s358 = smul.addr %s357, 8
      %s359 = scalar_lea.vmem %s0, %s358
      %s360 = smul.u32 2, %s24
      %s361 = smul.u32 2, %s24
      %p362 = scmp.lt.s32.totalorder %s23, 1
      %s363 = scalar_select %p362, %s23, 1
      %p364 = scmp.lt.s32.totalorder %s361, 1
      %s365 = scalar_select %p364, %s361, 1
      %s366 = smul.addr %s363, 2
      %s367 = sadd.s32 %s365, %s366
      %s368 = smul.addr %s367, 8
      %s369 = scalar_lea.vmem %s1, %s368
      %s370 = smul.u32 2, %s24
      %s371 = smul.u32 2, %s24
      %p372 = scmp.lt.s32.totalorder %s23, 1
      %s373 = scalar_select %p372, %s23, 1
      %p374 = scmp.lt.s32.totalorder %s371, 1
      %s375 = scalar_select %p374, %s371, 1
      %s376 = smul.addr %s373, 2
      %s377 = sadd.s32 %s375, %s376
      %s378 = smul.addr %s377, 8
      %s379 = scalar_lea.vmem %s8, %s378
      %s380 = smul.u32 2, %s24
      %v381 = vld [vmem:[%s359] sm:$0xff]
      %v382 = vld [vmem:[%s359 + $0x8] sm:$0xff]
      %v383 = vld [vmem:[%s369] sm:$0xff]
      %v384 = vld [vmem:[%s369 + $0x8] sm:$0xff]
      %v385 = vld [vmem:[%s2] sm:$0xff]
      %v386 = vld [vmem:[%s3] sm:$0xff]
      %388 = vset.pattern.permute.xlu0 0
      %389 = vperm.xlu0 %388, %v386
      %v390 = vpop.permute.xlu0 %389
      %vm392 = vcmask 64512
      %v394 = vsel %vm392, %v385, 0
      %396 = vmatprep.subr.mxu0 0.0
      %397 = vmatpush1.msra.mxu0 0.0
      %398 = vmatprep.subr.mxu0 0.0
      %399 = vmatpush1.msra.mxu0 0.0
      %400 = vmatprep.subr.mxu0 0.0
      %401 = vmatpush1.msra.mxu0 0.0
      %402 = vmatprep.subr.mxu0 0.0
      %403 = vmatpush1.msra.mxu0 0.0
      %404 = vmatprep.subr.mxu0 0.0
      %405 = vmatpush1.msra.mxu0 0.0
      %406 = vmatprep.subr.mxu0 0.0
      %407 = vmatpush1.msra.mxu0 0.0
      %408 = vmatprep.subr.mxu0 0.0
      %409 = vmatpush1.msra.mxu0 0.0
      %410 = vmatprep.subr.mxu0 0.0
      %411 = vmatpush1.msra.mxu0 0.0
      %412 = vmatprep.subr.mxu0 0.0
      %413 = vmatpush1.msra.mxu0 0.0
      %414 = vmatprep.subr.mxu0 0.0
      %415 = vmatpush1.msra.mxu0 0.0
      %416 = vmatprep.subr.mxu0 0.0
      %417 = vmatpush1.msra.mxu0 0.0
      %418 = vmatprep.subr.mxu0 0.0
      %419 = vmatpush1.msra.mxu0 0.0
      %420 = vmatprep.subr.mxu0 0.0
      %421 = vmatpush1.msra.mxu0 0.0
      %422 = vmatprep.subr.mxu0 0.0
      %423 = vmatpush1.msra.mxu0 0.0
      %424 = vmatprep.subr.mxu0 0.0
      %425 = vmatpush1.msra.mxu0 0.0
      %426 = vmatprep.subr.mxu0 %v382
      %427 = vmatpush1.msra.mxu0 %v381
      %428 = vmatprep.subr.mxu0 0.0
      %429 = vmatpush2.msra.mxu0 0.0
      %430 = vmatprep.subr.mxu0 0.0
      %431 = vmatpush2.msra.mxu0 0.0
      %432 = vmatprep.subr.mxu0 0.0
      %433 = vmatpush2.msra.mxu0 0.0
      %434 = vmatprep.subr.mxu0 0.0
      %435 = vmatpush2.msra.mxu0 0.0
      %436 = vmatprep.subr.mxu0 0.0
      %437 = vmatpush2.msra.mxu0 0.0
      %438 = vmatprep.subr.mxu0 0.0
      %439 = vmatpush2.msra.mxu0 0.0
      %440 = vmatprep.subr.mxu0 0.0
      %441 = vmatpush2.msra.mxu0 0.0
      %442 = vmatprep.subr.mxu0 0.0
      %443 = vmatpush2.msra.mxu0 0.0
      %444 = vmatprep.subr.mxu0 0.0
      %445 = vmatpush2.msra.mxu0 0.0
      %446 = vmatprep.subr.mxu0 0.0
      %447 = vmatpush2.msra.mxu0 0.0
      %448 = vmatprep.subr.mxu0 0.0
      %449 = vmatpush2.msra.mxu0 0.0
      %450 = vmatprep.subr.mxu0 0.0
      %451 = vmatpush2.msra.mxu0 0.0
      %452 = vmatprep.subr.mxu0 0.0
      %453 = vmatpush2.msra.mxu0 0.0
      %454 = vmatprep.subr.mxu0 0.0
      %455 = vmatpush2.msra.mxu0 0.0
      %456 = vmatprep.subr.mxu0 0.0
      %457 = vmatpush2.msra.mxu0 0.0
      %458 = vmatprep.subr.mxu0 0.0
      %459 = vmatpush2.msra.mxu0 0.0
      %460 = vmatprep.mubr.f32.mxu0 0.0
      %461 = vmatmul.mubr.f32.gmra.mxu0 %v394
      %v462 = vpop.f32.mrf.mxu0
      %v463 = vadd.f32 %v390, %v462
      %v464 = vpop.f32.mrf.mxu0
      %v465 = vadd.f32 %v390, %v464
      %466 = vdwg.mxu0
      %v467 = vld [vmem:[%s4] sm:$0xff]
      %v468 = vld [vmem:[%s5] sm:$0xff]
      %470 = vset.pattern.permute.xlu0 0
      %471 = vperm.xlu0 %470, %v468
      %v472 = vpop.permute.xlu0 %471
      %v475 = vsel %vm392, %v467, 0
      %477 = vmatprep.subr.mxu0 0.0
      %478 = vmatpush1.msra.mxu0 0.0
      %479 = vmatprep.subr.mxu0 0.0
      %480 = vmatpush1.msra.mxu0 0.0
      %481 = vmatprep.subr.mxu0 0.0
      %482 = vmatpush1.msra.mxu0 0.0
      %483 = vmatprep.subr.mxu0 0.0
      %484 = vmatpush1.msra.mxu0 0.0
      %485 = vmatprep.subr.mxu0 0.0
      %486 = vmatpush1.msra.mxu0 0.0
      %487 = vmatprep.subr.mxu0 0.0
      %488 = vmatpush1.msra.mxu0 0.0
      %489 = vmatprep.subr.mxu0 0.0
      %490 = vmatpush1.msra.mxu0 0.0
      %491 = vmatprep.subr.mxu0 0.0
      %492 = vmatpush1.msra.mxu0 0.0
      %493 = vmatprep.subr.mxu0 0.0
      %494 = vmatpush1.msra.mxu0 0.0
      %495 = vmatprep.subr.mxu0 0.0
      %496 = vmatpush1.msra.mxu0 0.0
      %497 = vmatprep.subr.mxu0 0.0
      %498 = vmatpush1.msra.mxu0 0.0
      %499 = vmatprep.subr.mxu0 0.0
      %500 = vmatpush1.msra.mxu0 0.0
      %501 = vmatprep.subr.mxu0 0.0
      %502 = vmatpush1.msra.mxu0 0.0
      %503 = vmatprep.subr.mxu0 0.0
      %504 = vmatpush1.msra.mxu0 0.0
      %505 = vmatprep.subr.mxu0 0.0
      %506 = vmatpush1.msra.mxu0 0.0
      %507 = vmatprep.subr.mxu0 %v384
      %508 = vmatpush1.msra.mxu0 %v383
      %509 = vmatprep.subr.mxu0 0.0
      %510 = vmatpush2.msra.mxu0 0.0
      %511 = vmatprep.subr.mxu0 0.0
      %512 = vmatpush2.msra.mxu0 0.0
      %513 = vmatprep.subr.mxu0 0.0
      %514 = vmatpush2.msra.mxu0 0.0
      %515 = vmatprep.subr.mxu0 0.0
      %516 = vmatpush2.msra.mxu0 0.0
      %517 = vmatprep.subr.mxu0 0.0
      %518 = vmatpush2.msra.mxu0 0.0
      %519 = vmatprep.subr.mxu0 0.0
      %520 = vmatpush2.msra.mxu0 0.0
      %521 = vmatprep.subr.mxu0 0.0
      %522 = vmatpush2.msra.mxu0 0.0
      %523 = vmatprep.subr.mxu0 0.0
      %524 = vmatpush2.msra.mxu0 0.0
      %525 = vmatprep.subr.mxu0 0.0
      %526 = vmatpush2.msra.mxu0 0.0
      %527 = vmatprep.subr.mxu0 0.0
      %528 = vmatpush2.msra.mxu0 0.0
      %529 = vmatprep.subr.mxu0 0.0
      %530 = vmatpush2.msra.mxu0 0.0
      %531 = vmatprep.subr.mxu0 0.0
      %532 = vmatpush2.msra.mxu0 0.0
      %533 = vmatprep.subr.mxu0 0.0
      %534 = vmatpush2.msra.mxu0 0.0
      %535 = vmatprep.subr.mxu0 0.0
      %536 = vmatpush2.msra.mxu0 0.0
      %537 = vmatprep.subr.mxu0 0.0
      %538 = vmatpush2.msra.mxu0 0.0
      %539 = vmatprep.subr.mxu0 0.0
      %540 = vmatpush2.msra.mxu0 0.0
      %541 = vmatprep.mubr.f32.mxu0 0.0
      %542 = vmatmul.mubr.f32.gmra.mxu0 %v475
      %v543 = vpop.f32.mrf.mxu0
      %v544 = vadd.f32 %v472, %v543
      %v545 = vpop.f32.mrf.mxu0
      %v546 = vadd.f32 %v472, %v545
      %547 = vdwg.mxu0
      %v548 = vmul.f32 %v463, %v544
      %v549 = vmul.f32 %v465, %v546
      %v550 = vld [vmem:[%s6] sm:$0xff]
      %v551 = vld [vmem:[%s7] sm:$0xff]
      %553 = vset.pattern.permute.xlu0 0
      %554 = vperm.xlu0 %553, %v551
      %v555 = vpop.permute.xlu0 %554
      %v558 = vsel %vm392, %v550, 0
      %560 = vmatprep.subr.mxu0 0.0
      %561 = vmatpush1.msra.mxu0 0.0
      %562 = vmatprep.subr.mxu0 0.0
      %563 = vmatpush1.msra.mxu0 0.0
      %564 = vmatprep.subr.mxu0 0.0
      %565 = vmatpush1.msra.mxu0 0.0
      %566 = vmatprep.subr.mxu0 0.0
      %567 = vmatpush1.msra.mxu0 0.0
      %568 = vmatprep.subr.mxu0 0.0
      %569 = vmatpush1.msra.mxu0 0.0
      %570 = vmatprep.subr.mxu0 0.0
      %571 = vmatpush1.msra.mxu0 0.0
      %572 = vmatprep.subr.mxu0 0.0
      %573 = vmatpush1.msra.mxu0 0.0
      %574 = vmatprep.subr.mxu0 0.0
      %575 = vmatpush1.msra.mxu0 0.0
      %576 = vmatprep.subr.mxu0 0.0
      %577 = vmatpush1.msra.mxu0 0.0
      %578 = vmatprep.subr.mxu0 0.0
      %579 = vmatpush1.msra.mxu0 0.0
      %580 = vmatprep.subr.mxu0 0.0
      %581 = vmatpush1.msra.mxu0 0.0
      %582 = vmatprep.subr.mxu0 0.0
      %583 = vmatpush1.msra.mxu0 0.0
      %584 = vmatprep.subr.mxu0 0.0
      %585 = vmatpush1.msra.mxu0 0.0
      %586 = vmatprep.subr.mxu0 0.0
      %587 = vmatpush1.msra.mxu0 0.0
      %588 = vmatprep.subr.mxu0 0.0
      %589 = vmatpush1.msra.mxu0 0.0
      %590 = vmatprep.subr.mxu0 %v549
      %591 = vmatpush1.msra.mxu0 %v548
      %592 = vmatprep.subr.mxu0 0.0
      %593 = vmatpush2.msra.mxu0 0.0
      %594 = vmatprep.subr.mxu0 0.0
      %595 = vmatpush2.msra.mxu0 0.0
      %596 = vmatprep.subr.mxu0 0.0
      %597 = vmatpush2.msra.mxu0 0.0
      %598 = vmatprep.subr.mxu0 0.0
      %599 = vmatpush2.msra.mxu0 0.0
      %600 = vmatprep.subr.mxu0 0.0
      %601 = vmatpush2.msra.mxu0 0.0
      %602 = vmatprep.subr.mxu0 0.0
      %603 = vmatpush2.msra.mxu0 0.0
      %604 = vmatprep.subr.mxu0 0.0
      %605 = vmatpush2.msra.mxu0 0.0
      %606 = vmatprep.subr.mxu0 0.0
      %607 = vmatpush2.msra.mxu0 0.0
      %608 = vmatprep.subr.mxu0 0.0
      %609 = vmatpush2.msra.mxu0 0.0
      %610 = vmatprep.subr.mxu0 0.0
      %611 = vmatpush2.msra.mxu0 0.0
      %612 = vmatprep.subr.mxu0 0.0
      %613 = vmatpush2.msra.mxu0 0.0
      %614 = vmatprep.subr.mxu0 0.0
      %615 = vmatpush2.msra.mxu0 0.0
      %616 = vmatprep.subr.mxu0 0.0
      %617 = vmatpush2.msra.mxu0 0.0
      %618 = vmatprep.subr.mxu0 0.0
      %619 = vmatpush2.msra.mxu0 0.0
      %620 = vmatprep.subr.mxu0 0.0
      %621 = vmatpush2.msra.mxu0 0.0
      %622 = vmatprep.subr.mxu0 0.0
      %623 = vmatpush2.msra.mxu0 0.0
      %624 = vmatprep.mubr.f32.mxu0 0.0
      %625 = vmatmul.mubr.f32.gmra.mxu0 %v558
      %v626 = vpop.f32.mrf.mxu0
      %v627 = vadd.f32 %v555, %v626
      %v628 = vpop.f32.mrf.mxu0
      %v629 = vadd.f32 %v555, %v628
      %630 = vdwg.mxu0
      %631 = vst [vmem:[%s379] sm:$0xff] %v627
      %632 = vst [vmem:[%s379 + $0x8] sm:$0xff] %v629
      %s633 = smul.u32 2, %s24
      %p634 = scmp.lt.s32.totalorder %s23, 1
      %s635 = scalar_select %p634, %s23, 1
      %p636 = scmp.lt.s32.totalorder %s633, 1
      %s637 = scalar_select %p636, %s633, 1
      %s638 = smul.addr %s635, 2
      %s639 = sadd.s32 %s637, %s638
      %s640 = smul.addr %s639, 8
      %s641 = scalar_lea.vmem %s8, %s640
      // Predicated region
      $region53: #{expert_forward.1} parent=51 // pred_check
        %p642 = pneg %p233
      $region54: #{expert_forward.1} parent=51 // pred_check_branch
        %644 = sbr.rel (%p642) target = $region56
      $region55: #{expert_forward.1} parent=51 // pred_region
        %s645 = smul.u32 2, %s24
      $region56: #{expert_forward.1} parent=51 // pred_fallthru
        _
    $region52: #{expert_forward.1} parent=5 // pred_fallthru
      _
    %p646 = scmp.le.s32.totalorder 2, %s14
    // Predicated region
    $region57: #{expert_forward.1} parent=5 // pred_check
      %p647 = pneg %p646
    $region58: #{expert_forward.1} parent=5 // pred_check_branch
      %649 = sbr.rel (%p647) target = $region60
    $region59: #{expert_forward.1} parent=5 // pred_region
      %s650 = ssub.s32 %s14, 2
      // Predicated region
      $region61: #{expert_forward.1} parent=59 // pred_check
        %p651 = pneg %p239
      $region62: #{expert_forward.1} parent=59 // pred_check_branch
        %653 = sbr.rel (%p651) target = $region64
      $region63: #{expert_forward.1} parent=59 // pred_region
        %s654 = smul.u32 2, %s26
        %p655 = scmp.lt.s32.totalorder %s25, 1
        %s656 = scalar_select %p655, %s25, 1
        %p657 = scmp.lt.s32.totalorder %s654, 1
        %s658 = scalar_select %p657, %s654, 1
        %s659 = smul.addr %s656, 2
        %s660 = sadd.s32 %s658, %s659
        %s661 = smul.addr %s660, 8
        %s662 = scalar_lea.vmem %s8, %s661
      $region64: #{expert_forward.1} parent=59 // pred_fallthru
        _
    $region60: #{expert_forward.1} parent=5 // pred_fallthru
      _
  $region6: #{expert_forward.1} parent=0 // loop_footer
    %s18 = sadd.s32 1, %s14
  $region7: #{expert_forward.1} parent=0 // loop_footer_branch
    %13 = sbr.rel target = $region3
  $region8: #{expert_forward.1} parent=0 // loop_exit
    _

</llo_original>
